<compile_context>
chip_gen: v6e
topology: v6e:2x2x1
jax: 0.10.0
libtpu: 0.0.40
codegen_flags: <defaults>
</compile_context>

<pallas_src>
import jax
import jax.numpy as jnp
from jax import lax
from jax.experimental import pallas as pl
from jax.experimental.pallas import tpu as pltpu


def _round_up(v: int, m: int) -> int:
    return ((v + m - 1) // m) * m


# ---------------------------------------------------------------------------
# Pallas kernel: one (tm, tn) output tile of y = x @ W.T + b, K-tiled.
# ---------------------------------------------------------------------------
def _linear_kernel(x_ref, w_ref, b_ref, o_ref, acc_ref):
    # x_ref  : (tm, tk)  tile of collapsed input rows
    # w_ref  : (tn, tk)  tile of the PyTorch-layout weight (F_out, F_in)
    # b_ref  : (1,  tn)  bias slice
    # o_ref  : (tm, tn)  output tile
    # acc_ref: (tm, tn)  float32 accumulator scratch (resident across K steps)
    k_step = pl.program_id(2)

    @pl.when(k_step == 0)
    def _():
        # Fold the bias into the accumulator init: finalize is then a pure cast+store.
        acc_ref[...] = jnp.broadcast_to(
            b_ref[...].astype(jnp.float32), acc_ref.shape
        )

    # Contract the last dim of both operands: x @ W.T, no materialized transpose.
    acc_ref[...] += lax.dot_general(
        x_ref[...], w_ref[...],
        dimension_numbers=(((1,), (1,)), ((), ())),
        preferred_element_type=jnp.float32,
    )

    @pl.when(k_step == pl.num_programs(2) - 1)
    def _():
        o_ref[...] = acc_ref[...].astype(o_ref.dtype)


def linear_pallas(x_flat: jax.Array, w: jax.Array, b: jax.Array,
                  *, tm: int = 256, tn: int = 256, tk: int = 512) -> jax.Array:
    """y = x_flat @ w.T + b  (PyTorch nn.Linear semantics), via Pallas.

    x_flat: (N, F_in), w: (F_out, F_in), b: (F_out,)
    """
    n, f_in = x_flat.shape
    f_out = w.shape[0]

    # Clamp tiles to the (aligned) problem size, keeping (8, 128) alignment.
    tm = min(tm, _round_up(n, 8))
    tn = min(tn, _round_up(f_out, 128))
    tk = min(tk, _round_up(f_in, 128))

    # Pad to tile multiples so big, lane-dense tiles work for any (P, B, F).
    n_p = _round_up(n, tm)
    fo_p = _round_up(f_out, tn)
    fi_p = _round_up(f_in, tk)

    if (n_p, fi_p) != (n, f_in):
        x_flat = jnp.pad(x_flat, ((0, n_p - n), (0, fi_p - f_in)))
    if (fo_p, fi_p) != (f_out, f_in):
        w = jnp.pad(w, ((0, fo_p - f_out), (0, fi_p - f_in)))
    b2d = b.reshape(1, f_out)
    if fo_p != f_out:
        b2d = jnp.pad(b2d, ((0, 0), (0, fo_p - f_out)))

    grid = (n_p // tm, fo_p // tn, fi_p // tk)
    dtype_bytes = x_flat.dtype.itemsize
    cost = pl.CostEstimate(
        flops=2 * n_p * fi_p * fo_p,
        transcendentals=0,
        bytes_accessed=(n_p * fi_p + fo_p * fi_p + fo_p + n_p * fo_p) * dtype_bytes,
    )

    y_p = pl.pallas_call(
        _linear_kernel,
        out_shape=jax.ShapeDtypeStruct((n_p, fo_p), x_flat.dtype),
        grid_spec=pltpu.PrefetchScalarGridSpec(
            num_scalar_prefetch=0,
            grid=grid,
            in_specs=[
                pl.BlockSpec((tm, tk), lambda i, j, k: (i, k)),   # x row/K tile
                pl.BlockSpec((tn, tk), lambda i, j, k: (j, k)),   # weight N/K tile
                pl.BlockSpec((1, tn), lambda i, j, k: (0, j)),    # bias slice
            ],
            out_specs=pl.BlockSpec((tm, tn), lambda i, j, k: (i, j)),
            scratch_shapes=[pltpu.VMEM((tm, tn), jnp.float32)],
        ),
        compiler_params=pltpu.CompilerParams(
            dimension_semantics=("parallel", "parallel", "arbitrary"),
        ),
        cost_estimate=cost,
    )(x_flat, w, b2d)

    if (n_p, fo_p) != (n, f_out):
        y_p = y_p[:n, :f_out]
    return y_p


# ---------------------------------------------------------------------------
# AdaptBatch forward (reshape glue in plain JAX, compute in Pallas)
# ---------------------------------------------------------------------------
def collapse_batch(x: jax.Array) -> jax.Array:
    return x.reshape((-1,) + x.shape[2:])


def separate_batch(x: jax.Array, k: int) -> jax.Array:
    return x.reshape((k, -1) + x.shape[1:])


def adapt_batch_forward(x: jax.Array, w: jax.Array, b: jax.Array) -> jax.Array:
    """AdaptBatch(nn.Linear(F_in, F_out)).forward((x,))."""
    # k = x[0].shape(1) in the PyTorch source; with x the (single) argument this is
    # the second dim of the first argument.
    k = x.shape[1]
    x_flat = collapse_batch(x)                 # (P*B, F_in)
    y_flat = linear_pallas(x_flat, w, b)       # wrapped module hot path (Pallas)
    return separate_batch(y_flat, k)           # (k, -1, F_out)


if __name__ == "__main__":
    # Small shapes: population P=4, batch B=8, features 32 -> 16
    P, B, F_IN, F_OUT = 4, 8, 32, 16

    key = jax.random.PRNGKey(0)
    kx, kw, kb = jax.random.split(key, 3)

    x = jax.random.normal(kx, (P, B, F_IN), dtype=jnp.float32)

    # Deterministic nn.Linear-style init: U(-1/sqrt(fan_in), 1/sqrt(fan_in))
    bound = 1.0 / (F_IN ** 0.5)
    w = jax.random.uniform(kw, (F_OUT, F_IN), jnp.float32, -bound, bound)
    b = jax.random.uniform(kb, (F_OUT,), jnp.float32, -bound, bound)

    y = adapt_batch_forward(x, w, b)
    y = jax.block_until_ready(y)

    # Reference check (plain JAX) — same collapse / linear / separate semantics.
    k = x.shape[1]
    y_ref = (x.reshape(-1, F_IN) @ w.T + b).reshape(k, -1, F_OUT)
    assert y.shape == (k, (P * B) // k, F_OUT)
    assert jnp.allclose(y, y_ref, atol=1e-5, rtol=1e-5)

    print("KERNEL_OK")
</pallas_src>

<mosaic_0001>
module attributes {stable_mosaic.version = 11 : i64} {
  func.func @_linear_kernel(%arg0: i32, %arg1: i32, %arg2: i32, %arg3: memref<32x128xf32, #tpu.memory_space<vmem>>, %arg4: memref<128x128xf32, #tpu.memory_space<vmem>>, %arg5: memref<1x128xf32, #tpu.memory_space<vmem>>, %arg6: memref<32x128xf32, #tpu.memory_space<vmem>>, %arg7: memref<32x128xf32, #tpu.memory_space<vmem>>) attributes {dimension_semantics = [#tpu.dimension_semantics<parallel>, #tpu.dimension_semantics<parallel>, #tpu.dimension_semantics<arbitrary>], iteration_bounds = array<i64: 1, 1, 1>, scalar_prefetch = 0 : i64, scratch_operands = 1 : i64, tpu.core_type = #tpu.core_type<tc>, window_params = [{transform_indices = @transform_0, window_bounds = array<i64: 32, 128>}, {transform_indices = @transform_1, window_bounds = array<i64: 128, 128>}, {transform_indices = @transform_2, window_bounds = array<i64: 1, 128>}, {transform_indices = @transform_3, window_bounds = array<i64: 32, 128>}]} {
    %c0_i32 = arith.constant 0 : i32
    %0 = arith.cmpi eq, %arg2, %c0_i32 : i32
    %1 = arith.extui %0 : i1 to i32
    %c0_i32_0 = arith.constant 0 : i32
    %2 = arith.cmpi ne, %1, %c0_i32_0 : i32
    scf.if %2 {
      %c0_10 = arith.constant 0 : index
      %c0_11 = arith.constant 0 : index
      %12 = vector.load %arg5[%c0_10, %c0_11] : memref<1x128xf32, #tpu.memory_space<vmem>>, vector<1x128xf32>
      %13 = vector.shape_cast %12 : vector<1x128xf32> to vector<1x128xf32>
      %14 = vector.broadcast %13 : vector<1x128xf32> to vector<32x128xf32>
      %c0_12 = arith.constant 0 : index
      %c0_13 = arith.constant 0 : index
      %15 = vector.load %arg7[%c0_12, %c0_13] : memref<32x128xf32, #tpu.memory_space<vmem>>, vector<32x128xf32>
      tpu.vector_store %arg7[%c0_12, %c0_13], %14 {strides = array<i32>} : memref<32x128xf32, #tpu.memory_space<vmem>>, vector<32x128xf32>,
    } else {
    }
    %c0 = arith.constant 0 : index
    %c0_1 = arith.constant 0 : index
    %3 = vector.load %arg7[%c0, %c0_1] : memref<32x128xf32, #tpu.memory_space<vmem>>, vector<32x128xf32>
    %c0_2 = arith.constant 0 : index
    %c0_3 = arith.constant 0 : index
    %4 = vector.load %arg3[%c0_2, %c0_3] : memref<32x128xf32, #tpu.memory_space<vmem>>, vector<32x128xf32>
    %c0_4 = arith.constant 0 : index
    %c0_5 = arith.constant 0 : index
    %5 = vector.load %arg4[%c0_4, %c0_5] : memref<128x128xf32, #tpu.memory_space<vmem>>, vector<128x128xf32>
    %cst = arith.constant dense<0.000000e+00> : vector<32x128xf32>
    %6 = tpu.matmul %4, %5, %cst {dimension_numbers = #tpu.dot_dimension_numbers<[1], [1], [0], [0], [0, 0, 1, 0], [], []>} : vector<32x128xf32>, vector<128x128xf32>, vector<32x128xf32> -> vector<32x128xf32>
    %7 = arith.addf %3, %6 : vector<32x128xf32>
    %c0_6 = arith.constant 0 : index
    %c0_7 = arith.constant 0 : index
    %8 = vector.load %arg7[%c0_6, %c0_7] : memref<32x128xf32, #tpu.memory_space<vmem>>, vector<32x128xf32>
    tpu.vector_store %arg7[%c0_6, %c0_7], %7 {strides = array<i32>} : memref<32x128xf32, #tpu.memory_space<vmem>>, vector<32x128xf32>,
    %c0_i32_8 = arith.constant 0 : i32
    %9 = arith.cmpi eq, %arg2, %c0_i32_8 : i32
    %10 = arith.extui %9 : i1 to i32
    %c0_i32_9 = arith.constant 0 : i32
    %11 = arith.cmpi ne, %10, %c0_i32_9 : i32
    scf.if %11 {
      %c0_10 = arith.constant 0 : index
      %c0_11 = arith.constant 0 : index
      %12 = vector.load %arg7[%c0_10, %c0_11] : memref<32x128xf32, #tpu.memory_space<vmem>>, vector<32x128xf32>
      %c0_12 = arith.constant 0 : index
      %c0_13 = arith.constant 0 : index
      %13 = vector.load %arg6[%c0_12, %c0_13] : memref<32x128xf32, #tpu.memory_space<vmem>>, vector<32x128xf32>
      tpu.vector_store %arg6[%c0_12, %c0_13], %12 {strides = array<i32>} : memref<32x128xf32, #tpu.memory_space<vmem>>, vector<32x128xf32>,
    } else {
    }
    return
  }
  func.func @transform_0(%arg0: i32, %arg1: i32, %arg2: i32) -> (i32, i32) {
    %c0_i32 = arith.constant 0 : i32
    return %arg0, %arg2 : i32, i32
  }
  func.func @transform_1(%arg0: i32, %arg1: i32, %arg2: i32) -> (i32, i32) {
    %c0_i32 = arith.constant 0 : i32
    return %arg1, %arg2 : i32, i32
  }
  func.func @transform_2(%arg0: i32, %arg1: i32, %arg2: i32) -> (i32, i32) {
    %c0_i32 = arith.constant 0 : i32
    %c0_i32_0 = arith.constant 0 : i32
    return %c0_i32, %arg1 : i32, i32
  }
  func.func @transform_3(%arg0: i32, %arg1: i32, %arg2: i32) -> (i32, i32) {
    %c0_i32 = arith.constant 0 : i32
    return %arg0, %arg1 : i32, i32
  }
}

</mosaic_0001>

<llo_original>
// kernel: tpu_custom_call.1
$region0: #{tpu_custom_call.1}
  #allocation0 [shape = 'u32[]', space=smem, size = 0x4, offset = 0x4, fixed_abs, tag = 'smem constant byte address 0x4 - core index']
  #allocation1 [shape = 'u32[144,128]{1,0:T(1,128)}', space=vmem, size = 0x12000, scoped, tag = 'internal scratch']
  #allocation2 [shape = 'f32[32,128]{1,0:T(8,128)}', space=vmem, size = 0x4000, scoped, tag = 'scratch operand']
  %s0 = inlined_call_operand.hbm [shape: f32[32,128], index: 0, kind: input, shape index: {}]
  %s1 = inlined_call_operand.hbm [shape: f32[128,128], index: 1, kind: input, shape index: {}]
  %s2 = inlined_call_operand.vmem [shape: f32[1,128], index: 2, kind: input, shape index: {}]
  %s3 = inlined_call_operand.hbm [shape: f32[32,128], index: 3, kind: output, shape index: {}]
  %s4 = sld [smem:[#allocation0]]
  $region38: #{tpu_custom_call.1} parent=0
    _
  %s6 = ssub.s32 1, %s4
  %s7 = scalar_select 0, %s6, %s4
  $region1: #{tpu_custom_call.1} parent=0
    #allocation3 [shape = 'u8[16384]{0}', space=vmem, size = 0x4000, scoped, tag = 'input window, operand 0, single buffered']
    #allocation4 [shape = 's32[1]{0}', space=sflag, size = 0x4, scoped, tag = 'scoped memory for tpu_custom_call.1']
    #allocation5 [shape = 's32[1]{0}', space=sflag, size = 0x4, scoped, tag = 'scoped memory for tpu_custom_call.1']
    #allocation6 [shape = 'u8[65536]{0}', space=vmem, size = 0x10000, scoped, tag = 'input window, operand 1, single buffered']
    #allocation7 [shape = 's32[1]{0}', space=sflag, size = 0x4, scoped, tag = 'scoped memory for tpu_custom_call.1']
    #allocation8 [shape = 'u8[16384]{0}', space=vmem, size = 0x4000, scoped, tag = 'output window, operand 0, single buffered']
    %8 = vsyncpa [#allocation4], 0
    %9 = vsyncpa [#allocation7], 0
    %10 = vsyncpa [#allocation5], 0
    // Predicated region
    $region2: #{tpu_custom_call.1} parent=1 // pred_check
      _
    $region3: #{tpu_custom_call.1} parent=1 // pred_check_branch
      %12 = sbr.rel (0) target = $region5
    $region4: #{tpu_custom_call.1} parent=1 // pred_region
      %s14 = ssub.s32 512, 512
      %15 = vsyncadd [#allocation4], %s14
      %s16 = sshll.u32 [#allocation3], 4
      %s17 = int_to_ptr.vmem [resolvable:$true] %s16
      %22 = dma.hbm_to_vmem [thread:$0]  %s0, 512, %s17, [#allocation4], 128, 128, 8
    $region5: #{tpu_custom_call.1} parent=1 // pred_fallthru
      _
    // Predicated region
    $region6: #{tpu_custom_call.1} parent=1 // pred_check
      _
    $region7: #{tpu_custom_call.1} parent=1 // pred_check_branch
      %24 = sbr.rel (0) target = $region9
    $region8: #{tpu_custom_call.1} parent=1 // pred_region
      %s26 = ssub.s32 2048, 2048
      %27 = vsyncadd [#allocation7], %s26
      %s28 = sshll.u32 [#allocation6], 4
      %s29 = int_to_ptr.vmem [resolvable:$true] %s28
      %34 = dma.hbm_to_vmem [thread:$0]  %s1, 2048, %s29, [#allocation7], 128, 128, 8
    $region9: #{tpu_custom_call.1} parent=1 // pred_fallthru
      _
    // Predicated region
    $region10: #{tpu_custom_call.1} parent=1 // pred_check
      _
    $region11: #{tpu_custom_call.1} parent=1 // pred_check_branch
      %36 = sbr.rel (0) target = $region13
    $region12: #{tpu_custom_call.1} parent=1 // pred_region
      _
    $region13: #{tpu_custom_call.1} parent=1 // pred_fallthru
      _
    // Predicated region
    $region14: #{tpu_custom_call.1} parent=1 // pred_check
      _
    $region15: #{tpu_custom_call.1} parent=1 // pred_check_branch
      %38 = sbr.rel (0) target = $region17
    $region16: #{tpu_custom_call.1} parent=1 // pred_region
      %39 = dma.done [#allocation4], 512
    $region17: #{tpu_custom_call.1} parent=1 // pred_fallthru
      _
    // Predicated region
    $region18: #{tpu_custom_call.1} parent=1 // pred_check
      _
    $region19: #{tpu_custom_call.1} parent=1 // pred_check_branch
      %41 = sbr.rel (0) target = $region21
    $region20: #{tpu_custom_call.1} parent=1 // pred_region
      %42 = dma.done [#allocation7], 2048
    $region21: #{tpu_custom_call.1} parent=1 // pred_fallthru
      _
    %p43 = scmp.eq.s32.totalorder 0, 0
    // Predicated region
    $region22: #{tpu_custom_call.1} parent=1 // pred_check
      %p44 = pneg %p43
    $region23: #{tpu_custom_call.1} parent=1 // pred_check_branch
      %46 = sbr.rel (%p44) target = $region25
    $region24: #{tpu_custom_call.1} parent=1 // pred_region
      %v47 = vld [vmem:[%s2] sm:$0x1]
      %v49 = vlaneseq
      %v50 = vshrl.u32 %v49, 7
      %v51 = vsub.s32 0, %v50
      %v52 = vrot.slane %v47, %v51
      %54 = vst [vmem:[#allocation2] sm:$0xff] %v52
      %55 = vst [vmem:[#allocation2 + $0x8] sm:$0xff] %v52
      %56 = vst [vmem:[#allocation2 + $0x10] sm:$0xff] %v52
      %57 = vst [vmem:[#allocation2 + $0x18] sm:$0xff] %v52
    $region25: #{tpu_custom_call.1} parent=1 // pred_fallthru
      _
    %v58 = vld [vmem:[#allocation2] sm:$0xff]
    %v59 = vld [vmem:[#allocation2 + $0x8] sm:$0xff]
    %v60 = vld [vmem:[#allocation2 + $0x10] sm:$0xff]
    %v61 = vld [vmem:[#allocation2 + $0x18] sm:$0xff]
    %v62 = vld [vmem:[#allocation3] sm:$0xff]
    %v63 = vld [vmem:[#allocation3 + $0x8] sm:$0xff]
    %v64 = vld [vmem:[#allocation3 + $0x10] sm:$0xff]
    %v65 = vld [vmem:[#allocation3 + $0x18] sm:$0xff]
    %v66 = vld [vmem:[#allocation6] sm:$0xff]
    %v67 = vld [vmem:[#allocation6 + $0x8] sm:$0xff]
    %v68 = vld [vmem:[#allocation6 + $0x10] sm:$0xff]
    %v69 = vld [vmem:[#allocation6 + $0x18] sm:$0xff]
    %v70 = vld [vmem:[#allocation6 + $0x20] sm:$0xff]
    %v71 = vld [vmem:[#allocation6 + $0x28] sm:$0xff]
    %v72 = vld [vmem:[#allocation6 + $0x30] sm:$0xff]
    %v73 = vld [vmem:[#allocation6 + $0x38] sm:$0xff]
    %v74 = vld [vmem:[#allocation6 + $0x40] sm:$0xff]
    %v75 = vld [vmem:[#allocation6 + $0x48] sm:$0xff]
    %v76 = vld [vmem:[#allocation6 + $0x50] sm:$0xff]
    %v77 = vld [vmem:[#allocation6 + $0x58] sm:$0xff]
    %v78 = vld [vmem:[#allocation6 + $0x60] sm:$0xff]
    %v79 = vld [vmem:[#allocation6 + $0x68] sm:$0xff]
    %v80 = vld [vmem:[#allocation6 + $0x70] sm:$0xff]
    %v81 = vld [vmem:[#allocation6 + $0x78] sm:$0xff]
    %82 = vmatprep.subr.mxu0 0.0
    %83 = vmatpush1.xpose.msra.mxu0 %v81
    %84 = vmatprep.subr.mxu0 0.0
    %85 = vmatpush1.xpose.msra.mxu0 %v80
    %86 = vmatprep.subr.mxu0 0.0
    %87 = vmatpush1.xpose.msra.mxu0 %v79
    %88 = vmatprep.subr.mxu0 0.0
    %89 = vmatpush1.xpose.msra.mxu0 %v78
    %90 = vmatprep.subr.mxu0 0.0
    %91 = vmatpush1.xpose.msra.mxu0 %v77
    %92 = vmatprep.subr.mxu0 0.0
    %93 = vmatpush1.xpose.msra.mxu0 %v76
    %94 = vmatprep.subr.mxu0 0.0
    %95 = vmatpush1.xpose.msra.mxu0 %v75
    %96 = vmatprep.subr.mxu0 0.0
    %97 = vmatpush1.xpose.msra.mxu0 %v74
    %98 = vmatprep.subr.mxu0 0.0
    %99 = vmatpush1.xpose.msra.mxu0 %v73
    %100 = vmatprep.subr.mxu0 0.0
    %101 = vmatpush1.xpose.msra.mxu0 %v72
    %102 = vmatprep.subr.mxu0 0.0
    %103 = vmatpush1.xpose.msra.mxu0 %v71
    %104 = vmatprep.subr.mxu0 0.0
    %105 = vmatpush1.xpose.msra.mxu0 %v70
    %106 = vmatprep.subr.mxu0 0.0
    %107 = vmatpush1.xpose.msra.mxu0 %v69
    %108 = vmatprep.subr.mxu0 0.0
    %109 = vmatpush1.xpose.msra.mxu0 %v68
    %110 = vmatprep.subr.mxu0 0.0
    %111 = vmatpush1.xpose.msra.mxu0 %v67
    %112 = vmatprep.subr.mxu0 0.0
    %113 = vmatpush1.xpose.msra.mxu0 %v66
    %114 = vmatprep.subr.mxu0 0.0
    %115 = vmatpush2.xpose.msra.mxu0 0.0
    %116 = vmatprep.subr.mxu0 0.0
    %117 = vmatpush2.xpose.msra.mxu0 0.0
    %118 = vmatprep.subr.mxu0 0.0
    %119 = vmatpush2.xpose.msra.mxu0 0.0
    %120 = vmatprep.subr.mxu0 0.0
    %121 = vmatpush2.xpose.msra.mxu0 0.0
    %122 = vmatprep.subr.mxu0 0.0
    %123 = vmatpush2.xpose.msra.mxu0 0.0
    %124 = vmatprep.subr.mxu0 0.0
    %125 = vmatpush2.xpose.msra.mxu0 0.0
    %126 = vmatprep.subr.mxu0 0.0
    %127 = vmatpush2.xpose.msra.mxu0 0.0
    %128 = vmatprep.subr.mxu0 0.0
    %129 = vmatpush2.xpose.msra.mxu0 0.0
    %130 = vmatprep.subr.mxu0 0.0
    %131 = vmatpush2.xpose.msra.mxu0 0.0
    %132 = vmatprep.subr.mxu0 0.0
    %133 = vmatpush2.xpose.msra.mxu0 0.0
    %134 = vmatprep.subr.mxu0 0.0
    %135 = vmatpush2.xpose.msra.mxu0 0.0
    %136 = vmatprep.subr.mxu0 0.0
    %137 = vmatpush2.xpose.msra.mxu0 0.0
    %138 = vmatprep.subr.mxu0 0.0
    %139 = vmatpush2.xpose.msra.mxu0 0.0
    %140 = vmatprep.subr.mxu0 0.0
    %141 = vmatpush2.xpose.msra.mxu0 0.0
    %142 = vmatprep.subr.mxu0 0.0
    %143 = vmatpush2.xpose.msra.mxu0 0.0
    %144 = vmatprep.subr.mxu0 0.0
    %145 = vmatpush2.xpose.msra.mxu0 0.0
    %146 = vmatprep.mubr.f32.mxu0 0.0
    %147 = vmatmul.mubr.f32.gmra.mxu0 %v62
    %v148 = vpop.f32.mrf.mxu0
    %v149 = vadd.f32 0.0, %v148
    %v150 = vpop.f32.mrf.mxu0
    %151 = vmatprep.mubr.f32.mxu0 0.0
    %152 = vmatmul.mubr.f32.gmra.mxu0 %v63
    %v153 = vpop.f32.mrf.mxu0
    %v154 = vadd.f32 0.0, %v153
    %v155 = vpop.f32.mrf.mxu0
    %156 = vmatprep.mubr.f32.mxu0 0.0
    %157 = vmatmul.mubr.f32.gmra.mxu0 %v64
    %v158 = vpop.f32.mrf.mxu0
    %v159 = vadd.f32 0.0, %v158
    %v160 = vpop.f32.mrf.mxu0
    %161 = vmatprep.mubr.f32.mxu0 0.0
    %162 = vmatmul.mubr.f32.gmra.mxu0 %v65
    %v163 = vpop.f32.mrf.mxu0
    %v164 = vadd.f32 0.0, %v163
    %v165 = vpop.f32.mrf.mxu0
    %166 = vdwg.mxu0
    %v167 = vadd.f32 %v58, %v149
    %v168 = vadd.f32 %v59, %v154
    %v169 = vadd.f32 %v60, %v159
    %v170 = vadd.f32 %v61, %v164
    %171 = vst [vmem:[#allocation2] sm:$0xff] %v167
    %172 = vst [vmem:[#allocation2 + $0x8] sm:$0xff] %v168
    %173 = vst [vmem:[#allocation2 + $0x10] sm:$0xff] %v169
    %174 = vst [vmem:[#allocation2 + $0x18] sm:$0xff] %v170
    // Predicated region
    $region26: #{tpu_custom_call.1} parent=1 // pred_check
      %p175 = pneg %p43
    $region27: #{tpu_custom_call.1} parent=1 // pred_check_branch
      %177 = sbr.rel (%p175) target = $region29
    $region28: #{tpu_custom_call.1} parent=1 // pred_region
      %v178 = vld [vmem:[#allocation2] sm:$0xff]
      %v179 = vld [vmem:[#allocation2 + $0x8] sm:$0xff]
      %v180 = vld [vmem:[#allocation2 + $0x10] sm:$0xff]
      %v181 = vld [vmem:[#allocation2 + $0x18] sm:$0xff]
      %182 = vst [vmem:[#allocation8] sm:$0xff] %v178
      %183 = vst [vmem:[#allocation8 + $0x8] sm:$0xff] %v179
      %184 = vst [vmem:[#allocation8 + $0x10] sm:$0xff] %v180
      %185 = vst [vmem:[#allocation8 + $0x18] sm:$0xff] %v181
    $region29: #{tpu_custom_call.1} parent=1 // pred_fallthru
      _
    // Predicated region
    $region30: #{tpu_custom_call.1} parent=1 // pred_check
      _
    $region31: #{tpu_custom_call.1} parent=1 // pred_check_branch
      %187 = sbr.rel (0) target = $region33
    $region32: #{tpu_custom_call.1} parent=1 // pred_region
      %s189 = ssub.s32 512, 512
      %190 = vsyncadd [#allocation5], %s189
      %s191 = sshll.u32 [#allocation8], 4
      %s192 = int_to_ptr.vmem [resolvable:$true] %s191
      %197 = dma.vmem_to_hbm [thread:$0]  %s192, 512, %s3, [#allocation5], 128, 128, 8
    $region33: #{tpu_custom_call.1} parent=1 // pred_fallthru
      _
    // Predicated region
    $region34: #{tpu_custom_call.1} parent=1 // pred_check
      _
    $region35: #{tpu_custom_call.1} parent=1 // pred_check_branch
      %199 = sbr.rel (0) target = $region37
    $region36: #{tpu_custom_call.1} parent=1 // pred_region
      %200 = dma.done [#allocation5], 512
    $region37: #{tpu_custom_call.1} parent=1 // pred_fallthru
      _
    %201 = vsyncpa [#allocation4], 1
    %202 = vsyncpa [#allocation7], 1
    %203 = vsyncpa [#allocation5], 1

</llo_original>
